<compile_context>
chip_gen: v5e
topology: v5e:2x2
jax: 0.10.0
libtpu: 0.0.40
codegen_flags: <defaults>
</compile_context>

<pallas_src>
import functools

import jax
import jax.numpy as jnp
from jax.experimental import pallas as pl
from jax.experimental.pallas import tpu as pltpu

# module constants (from the PyTorch script)
HIDDEN_SIZE = 20
INPUT_SIZE = 10
BATCH_SIZE = 10
OUTPUT_SIZE = 3   # unused by the forward pass (only W = Linear(in+hid, hid) exists)
SEQ_LEN = 5


def rnn_kernel(xflat_ref, w_ref, h_ref):
    """Whole recurrence in one kernel invocation.

    xflat_ref: (T*B, I)        float32 VMEM  (time-major, flattened over (t, b))
    w_ref    : (ceil8(I+H+1),H) float32 VMEM  packed [wxT (I,H); whT (H,H); b (1,H); pad]
    h_ref    : (B, H)          float32 VMEM  (last hidden state; also the cell output y)
    """
    B, H = h_ref.shape
    TB, I = xflat_ref.shape
    T = TB // B

    # static row-slices of the packed weight block (no runtime cost)
    wxT = w_ref[0:I, :]                   # (I, H)
    whT = w_ref[I:I + H, :]               # (H, H)
    b = w_ref[I + H:I + H + 1, :]         # (1, H)

    # One batched matmul for the x-projection of every timestep, bias folded in
    # once.  This is the only place the x data and the bias are touched.
    proj = jnp.dot(xflat_ref[...], wxT,
                   preferred_element_type=jnp.float32) + b              # (T*B, H)

    # t = 0 peeled: h0 == 0, so h0 @ whT is identically zero.
    h = jnp.tanh(proj[0:B, :])

    # T is tiny (5) and static -> unrolled Python loop; only one MXU matmul per
    # step remains on the serial dependency chain.
    # (If T grows beyond ~16, switch to lax.fori_loop(..., unroll=2..4) with h
    #  in a VMEM scratch and proj written once to a VMEM scratch read via ref
    #  slicing, to bound vreg live ranges.)
    for t in range(1, T):
        p_t = proj[t * B:(t + 1) * B, :]                                 # (B, H)
        h = jnp.tanh(p_t + jnp.dot(h, whT,
                                   preferred_element_type=jnp.float32))

    h_ref[...] = h


@jax.jit
def rnn_forward(xs, W, b):
    """xs: (B, T, I); W: (H, I+H) as in nn.Linear; b: (H,). Returns (y, h), y == h."""
    B, T, I = xs.shape
    H = W.shape[0]
    assert W.shape == (H, I + H)

    # weight prep (fused into the same XLA program as the pallas_call via jit)
    wxT = W[:, :I].T.astype(jnp.float32)          # (I, H)
    whT = W[:, I:].T.astype(jnp.float32)          # (H, H)
    b2d = b.reshape(1, H).astype(jnp.float32)     # (1, H)

    # pack [wxT; whT; b] into one contiguous VMEM operand (one DMA instead of 3)
    rows = I + H + 1
    padded_rows = ((rows + 7) // 8) * 8
    pad = jnp.zeros((padded_rows - rows, H), dtype=jnp.float32)
    w_pack = jnp.concatenate([wxT, whT, b2d, pad], axis=0)               # (ceil8, H)

    # time-major, flattened layout so the kernel's per-step read of the
    # precomputed projection is a contiguous row-block
    xs_flat = jnp.transpose(xs, (1, 0, 2)).reshape(T * B, I).astype(jnp.float32)

    vmem = pl.BlockSpec(memory_space=pltpu.MemorySpace.VMEM)
    h = pl.pallas_call(
        rnn_kernel,
        out_shape=jax.ShapeDtypeStruct((B, H), jnp.float32),
        in_specs=[vmem, vmem],
        out_specs=vmem,
    )(xs_flat, w_pack)
    return h, h


def rnn_reference(xs, W, b):
    """Pure-JAX reference matching the PyTorch forward."""
    B = xs.shape[0]
    H = W.shape[0]
    h = jnp.zeros((B, H), dtype=jnp.float32)
    for t in range(xs.shape[1]):
        cat = jnp.concatenate([xs[:, t, :], h], axis=-1)
        h = jnp.tanh(cat @ W.T + b)
    return h, h


if __name__ == "__main__":
    key = jax.random.PRNGKey(0)
    k_x, k_w, k_b = jax.random.split(key, 3)

    # input: (batch, seq, input) as implied by xs[:, t, :]
    xs = jax.random.normal(k_x, (BATCH_SIZE, SEQ_LEN, INPUT_SIZE), dtype=jnp.float32)

    # deterministic nn.Linear-style init: U(-1/sqrt(fan_in), 1/sqrt(fan_in))
    fan_in = INPUT_SIZE + HIDDEN_SIZE
    bound = 1.0 / (fan_in ** 0.5)
    W = jax.random.uniform(k_w, (HIDDEN_SIZE, fan_in),
                           minval=-bound, maxval=bound, dtype=jnp.float32)
    b = jax.random.uniform(k_b, (HIDDEN_SIZE,),
                           minval=-bound, maxval=bound, dtype=jnp.float32)

    y, h = rnn_forward(xs, W, b)
    jax.block_until_ready((y, h))

    y_ref, h_ref = rnn_reference(xs, W, b)
    assert jnp.allclose(y, y_ref, atol=1e-5, rtol=1e-5), "y mismatch vs reference"
    assert jnp.allclose(h, h_ref, atol=1e-5, rtol=1e-5), "h mismatch vs reference"

    print("KERNEL_OK")
</pallas_src>

<mosaic_0001>
module attributes {stable_mosaic.version = 11 : i64} {
  func.func @rnn_kernel(%arg0: memref<50x10xf32, #tpu.memory_space<vmem>>, %arg1: memref<32x20xf32, #tpu.memory_space<vmem>>, %arg2: memref<10x20xf32, #tpu.memory_space<vmem>>) attributes {dimension_semantics = [], scalar_prefetch = 0 : i64, scratch_operands = 0 : i64, tpu.core_type = #tpu.core_type<tc>} {
    %c0 = arith.constant 0 : index
    %c0_0 = arith.constant 0 : index
    %0 = vector.load %arg1[%c0, %c0_0] : memref<32x20xf32, #tpu.memory_space<vmem>>, vector<10x20xf32>
    %c10 = arith.constant 10 : index
    %c0_1 = arith.constant 0 : index
    %1 = vector.load %arg1[%c10, %c0_1] : memref<32x20xf32, #tpu.memory_space<vmem>>, vector<20x20xf32>
    %c30 = arith.constant 30 : index
    %c0_2 = arith.constant 0 : index
    %2 = vector.load %arg1[%c30, %c0_2] : memref<32x20xf32, #tpu.memory_space<vmem>>, vector<1x20xf32>
    %c0_3 = arith.constant 0 : index
    %c0_4 = arith.constant 0 : index
    %3 = vector.load %arg0[%c0_3, %c0_4] : memref<50x10xf32, #tpu.memory_space<vmem>>, vector<50x10xf32>
    %cst = arith.constant dense<0.000000e+00> : vector<50x20xf32>
    %4 = tpu.matmul %3, %0, %cst {dimension_numbers = #tpu.dot_dimension_numbers<[1], [0], [0], [1], [0, 0, 1, 1], [], []>} : vector<50x10xf32>, vector<10x20xf32>, vector<50x20xf32> -> vector<50x20xf32>
    %5 = vector.broadcast %2 : vector<1x20xf32> to vector<50x20xf32>
    %6 = arith.addf %4, %5 : vector<50x20xf32>
    %7 = vector.extract_strided_slice %6 {offsets = [0, 0], sizes = [10, 20], strides = [1, 1]} : vector<50x20xf32> to vector<10x20xf32>
    %8 = math.tanh %7 : vector<10x20xf32>
    %9 = vector.extract_strided_slice %6 {offsets = [10, 0], sizes = [10, 20], strides = [1, 1]} : vector<50x20xf32> to vector<10x20xf32>
    %cst_5 = arith.constant dense<0.000000e+00> : vector<10x20xf32>
    %10 = tpu.matmul %8, %1, %cst_5 {dimension_numbers = #tpu.dot_dimension_numbers<[1], [0], [0], [1], [0, 0, 1, 1], [], []>} : vector<10x20xf32>, vector<20x20xf32>, vector<10x20xf32> -> vector<10x20xf32>
    %11 = arith.addf %9, %10 : vector<10x20xf32>
    %12 = math.tanh %11 : vector<10x20xf32>
    %13 = vector.extract_strided_slice %6 {offsets = [20, 0], sizes = [10, 20], strides = [1, 1]} : vector<50x20xf32> to vector<10x20xf32>
    %cst_6 = arith.constant dense<0.000000e+00> : vector<10x20xf32>
    %14 = tpu.matmul %12, %1, %cst_6 {dimension_numbers = #tpu.dot_dimension_numbers<[1], [0], [0], [1], [0, 0, 1, 1], [], []>} : vector<10x20xf32>, vector<20x20xf32>, vector<10x20xf32> -> vector<10x20xf32>
    %15 = arith.addf %13, %14 : vector<10x20xf32>
    %16 = math.tanh %15 : vector<10x20xf32>
    %17 = vector.extract_strided_slice %6 {offsets = [30, 0], sizes = [10, 20], strides = [1, 1]} : vector<50x20xf32> to vector<10x20xf32>
    %cst_7 = arith.constant dense<0.000000e+00> : vector<10x20xf32>
    %18 = tpu.matmul %16, %1, %cst_7 {dimension_numbers = #tpu.dot_dimension_numbers<[1], [0], [0], [1], [0, 0, 1, 1], [], []>} : vector<10x20xf32>, vector<20x20xf32>, vector<10x20xf32> -> vector<10x20xf32>
    %19 = arith.addf %17, %18 : vector<10x20xf32>
    %20 = math.tanh %19 : vector<10x20xf32>
    %21 = vector.extract_strided_slice %6 {offsets = [40, 0], sizes = [10, 20], strides = [1, 1]} : vector<50x20xf32> to vector<10x20xf32>
    %cst_8 = arith.constant dense<0.000000e+00> : vector<10x20xf32>
    %22 = tpu.matmul %20, %1, %cst_8 {dimension_numbers = #tpu.dot_dimension_numbers<[1], [0], [0], [1], [0, 0, 1, 1], [], []>} : vector<10x20xf32>, vector<20x20xf32>, vector<10x20xf32> -> vector<10x20xf32>
    %23 = arith.addf %21, %22 : vector<10x20xf32>
    %24 = math.tanh %23 : vector<10x20xf32>
    %c0_9 = arith.constant 0 : index
    %c0_10 = arith.constant 0 : index
    %25 = vector.load %arg2[%c0_9, %c0_10] : memref<10x20xf32, #tpu.memory_space<vmem>>, vector<10x20xf32>
    tpu.vector_store %arg2[%c0_9, %c0_10], %24 {strides = array<i32>} : memref<10x20xf32, #tpu.memory_space<vmem>>, vector<10x20xf32>,
    return
  }
}

</mosaic_0001>

<llo_original>
// kernel: rnn_forward.1
$region0: #{rnn_forward.1}
  #allocation0 [shape = 'u32[]', space=smem, size = 0x4, offset = 0x4, fixed_abs, tag = 'smem constant byte address 0x4 - core index']
  #allocation1 [shape = 'u32[72,128]{1,0:T(1,128)}', space=vmem, size = 0x9000, scoped, tag = 'internal scratch']
  %s0 = inlined_call_operand.vmem [shape: f32[50,10], index: 0, kind: input, shape index: {}]
  %s1 = inlined_call_operand.vmem [shape: f32[32,20], index: 1, kind: input, shape index: {}]
  %s2 = inlined_call_operand.vmem [shape: f32[10,20], index: 2, kind: output, shape index: {}]
  %s3 = sld [smem:[#allocation0]]
  $region18: #{rnn_forward.1} parent=0
    _
  %s5 = ssub.s32 1, %s3
  %s6 = scalar_select 0, %s5, %s3
  // Predicated region
  $region2: #{rnn_forward.1} parent=0 // pred_check
    _
  $region3: #{rnn_forward.1} parent=0 // pred_check_branch
    %8 = sbr.rel (0) target = $region5
  $region4: #{rnn_forward.1} parent=0 // pred_region
    _
  $region5: #{rnn_forward.1} parent=0 // pred_fallthru
    _
  // Predicated region
  $region6: #{rnn_forward.1} parent=0 // pred_check
    _
  $region7: #{rnn_forward.1} parent=0 // pred_check_branch
    %10 = sbr.rel (0) target = $region9
  $region8: #{rnn_forward.1} parent=0 // pred_region
    _
  $region9: #{rnn_forward.1} parent=0 // pred_fallthru
    _
  %v11 = vld [vmem:[%s1] sm:$0xff]
  %v12 = vld [vmem:[%s1 + $0x8] sm:$0x3]
  %v13 = vld [vmem:[%s1 + $0xa] sm:$0xff]
  %v14 = vld [vmem:[%s1 + $0x12] sm:$0xff]
  %v15 = vld [vmem:[%s1 + $0x1a] sm:$0xf]
  %v16 = vld [vmem:[%s1 + $0x1e] sm:$0x1]
  %v17 = vld [vmem:[%s0] sm:$0xff]
  %v18 = vld [vmem:[%s0 + $0x8] sm:$0xff]
  %v19 = vld [vmem:[%s0 + $0x10] sm:$0xff]
  %v20 = vld [vmem:[%s0 + $0x18] sm:$0xff]
  %v21 = vld [vmem:[%s0 + $0x20] sm:$0xff]
  %v22 = vld [vmem:[%s0 + $0x28] sm:$0xff]
  %v23 = vld [vmem:[%s0 + $0x30] sm:$0x3]
  %v24 = vperm.slane %v16, 0
  %vm25 = vcmask 80896
  %v27 = vsel %vm25, %v17, 0
  %v30 = vsel %vm25, %v18, 0
  %v33 = vsel %vm25, %v19, 0
  %v36 = vsel %vm25, %v20, 0
  %v39 = vsel %vm25, %v21, 0
  %v42 = vsel %vm25, %v22, 0
  %v45 = vsel %vm25, %v23, 0
  %vm47 = vcmask 1041408
  %v49 = vsel %vm47, %v12, 0
  %51 = vmatpush.msra.mxu0 0.0
  %52 = vmatpush.msra.mxu0 0.0
  %53 = vmatpush.msra.mxu0 0.0
  %54 = vmatpush.msra.mxu0 0.0
  %55 = vmatpush.msra.mxu0 0.0
  %56 = vmatpush.msra.mxu0 0.0
  %57 = vmatpush.msra.mxu0 0.0
  %58 = vmatpush.msra.mxu0 0.0
  %59 = vmatpush.msra.mxu0 0.0
  %60 = vmatpush.msra.mxu0 0.0
  %61 = vmatpush.msra.mxu0 0.0
  %62 = vmatpush.msra.mxu0 0.0
  %63 = vmatpush.msra.mxu0 0.0
  %64 = vmatpush.msra.mxu0 0.0
  %65 = vmatpush.msra.mxu0 %v49
  %66 = vmatpush.msra.mxu0 %v11
  %67 = vmatmul.f32.gmra.mxu0 %v27
  %v68 = vpop.f32.mrf.mxu0
  %v69 = vadd.f32 %v24, %v68
  %70 = vmatmul.f32.gmra.mxu0 %v30
  %v71 = vpop.f32.mrf.mxu0
  %v72 = vadd.f32 %v24, %v71
  %73 = vmatmul.f32.gmra.mxu0 %v33
  %v74 = vpop.f32.mrf.mxu0
  %v75 = vadd.f32 %v24, %v74
  %76 = vmatmul.f32.gmra.mxu0 %v36
  %v77 = vpop.f32.mrf.mxu0
  %v78 = vadd.f32 %v24, %v77
  %79 = vmatmul.f32.gmra.mxu0 %v39
  %v80 = vpop.f32.mrf.mxu0
  %v81 = vadd.f32 %v24, %v80
  %82 = vmatmul.f32.gmra.mxu0 %v42
  %v83 = vpop.f32.mrf.mxu0
  %v84 = vadd.f32 %v24, %v83
  %85 = vmatmul.f32.gmra.mxu0 %v45
  %v86 = vpop.f32.mrf.mxu0
  %v87 = vadd.f32 %v24, %v86
  %88 = vdwg.mxu0
  %v89 = vtanh.pop %v69
  %v90 = vtanh.pop %v72
  %vm91 = vcmask 162816
  %v93 = vsel %vm91, %v89, 0
  %v96 = vsel %vm91, %v90, 0
  %vm98 = vcmask 1043456
  %v100 = vsel %vm98, %v15, 0
  %102 = vmatpush.msra.mxu0 0.0
  %103 = vmatpush.msra.mxu0 0.0
  %104 = vmatpush.msra.mxu0 0.0
  %105 = vmatpush.msra.mxu0 0.0
  %106 = vmatpush.msra.mxu0 0.0
  %107 = vmatpush.msra.mxu0 0.0
  %108 = vmatpush.msra.mxu0 0.0
  %109 = vmatpush.msra.mxu0 0.0
  %110 = vmatpush.msra.mxu0 0.0
  %111 = vmatpush.msra.mxu0 0.0
  %112 = vmatpush.msra.mxu0 0.0
  %113 = vmatpush.msra.mxu0 0.0
  %114 = vmatpush.msra.mxu0 0.0
  %115 = vmatpush.msra.mxu0 %v100
  %116 = vmatpush.msra.mxu0 %v14
  %117 = vmatpush.msra.mxu0 %v13
  %118 = vmatmul.f32.gmra.mxu0 %v93
  %v119 = vpop.f32.mrf.mxu0
  %v120 = vadd.f32 0.0, %v119
  %121 = vmatmul.f32.gmra.mxu0 %v96
  %v122 = vpop.f32.mrf.mxu0
  %v123 = vadd.f32 0.0, %v122
  %124 = vdwg.mxu0
  %v127 = vrot.slane %v120, 6
  %v128 = vrot.slane %v123, 6
  %v129 = vsel %vm47, %v127, %v128
  %v132 = vadd.f32 %v72, %v127
  %v133 = vadd.f32 %v75, %v129
  %v134 = vtanh.pop %v132
  %v135 = vtanh.pop %v133
  %vm138 = vcmask 1045504
  %v139 = vrot.slane %v134, 2
  %v140 = vrot.slane %v135, 2
  %v141 = vsel %vm138, %v139, %v140
  %v142 = vsel %vm91, %v141, 0
  %v144 = vsel %vm91, %v140, 0
  %146 = vmatpush.msra.mxu0 0.0
  %147 = vmatpush.msra.mxu0 0.0
  %148 = vmatpush.msra.mxu0 0.0
  %149 = vmatpush.msra.mxu0 0.0
  %150 = vmatpush.msra.mxu0 0.0
  %151 = vmatpush.msra.mxu0 0.0
  %152 = vmatpush.msra.mxu0 0.0
  %153 = vmatpush.msra.mxu0 0.0
  %154 = vmatpush.msra.mxu0 0.0
  %155 = vmatpush.msra.mxu0 0.0
  %156 = vmatpush.msra.mxu0 0.0
  %157 = vmatpush.msra.mxu0 0.0
  %158 = vmatpush.msra.mxu0 0.0
  %159 = vmatpush.msra.mxu0 %v100
  %160 = vmatpush.msra.mxu0 %v14
  %161 = vmatpush.msra.mxu0 %v13
  %162 = vmatmul.f32.gmra.mxu0 %v142
  %v163 = vpop.f32.mrf.mxu0
  %v164 = vadd.f32 0.0, %v163
  %165 = vmatmul.f32.gmra.mxu0 %v144
  %v166 = vpop.f32.mrf.mxu0
  %v167 = vadd.f32 0.0, %v166
  %168 = vdwg.mxu0
  %v171 = vrot.slane %v164, 4
  %v172 = vrot.slane %v167, 4
  %v173 = vsel %vm98, %v171, %v172
  %v176 = vadd.f32 %v75, %v171
  %v177 = vadd.f32 %v78, %v173
  %v178 = vtanh.pop %v176
  %v179 = vtanh.pop %v177
  %v182 = vrot.slane %v178, 4
  %v183 = vrot.slane %v179, 4
  %v184 = vsel %vm98, %v182, %v183
  %v185 = vsel %vm91, %v184, 0
  %v187 = vsel %vm91, %v183, 0
  %189 = vmatpush.msra.mxu0 0.0
  %190 = vmatpush.msra.mxu0 0.0
  %191 = vmatpush.msra.mxu0 0.0
  %192 = vmatpush.msra.mxu0 0.0
  %193 = vmatpush.msra.mxu0 0.0
  %194 = vmatpush.msra.mxu0 0.0
  %195 = vmatpush.msra.mxu0 0.0
  %196 = vmatpush.msra.mxu0 0.0
  %197 = vmatpush.msra.mxu0 0.0
  %198 = vmatpush.msra.mxu0 0.0
  %199 = vmatpush.msra.mxu0 0.0
  %200 = vmatpush.msra.mxu0 0.0
  %201 = vmatpush.msra.mxu0 0.0
  %202 = vmatpush.msra.mxu0 %v100
  %203 = vmatpush.msra.mxu0 %v14
  %204 = vmatpush.msra.mxu0 %v13
  %205 = vmatmul.f32.gmra.mxu0 %v185
  %v206 = vpop.f32.mrf.mxu0
  %v207 = vadd.f32 0.0, %v206
  %208 = vmatmul.f32.gmra.mxu0 %v187
  %v209 = vpop.f32.mrf.mxu0
  %v210 = vadd.f32 0.0, %v209
  %211 = vdwg.mxu0
  %v214 = vrot.slane %v207, 2
  %v215 = vrot.slane %v210, 2
  %v216 = vsel %vm138, %v214, %v215
  %v219 = vadd.f32 %v78, %v214
  %v220 = vadd.f32 %v81, %v216
  %v221 = vtanh.pop %v219
  %v222 = vtanh.pop %v220
  %v225 = vrot.slane %v221, 6
  %v226 = vrot.slane %v222, 6
  %v227 = vsel %vm47, %v225, %v226
  %v228 = vsel %vm91, %v227, 0
  %v230 = vsel %vm91, %v226, 0
  %232 = vmatpush.msra.mxu0 0.0
  %233 = vmatpush.msra.mxu0 0.0
  %234 = vmatpush.msra.mxu0 0.0
  %235 = vmatpush.msra.mxu0 0.0
  %236 = vmatpush.msra.mxu0 0.0
  %237 = vmatpush.msra.mxu0 0.0
  %238 = vmatpush.msra.mxu0 0.0
  %239 = vmatpush.msra.mxu0 0.0
  %240 = vmatpush.msra.mxu0 0.0
  %241 = vmatpush.msra.mxu0 0.0
  %242 = vmatpush.msra.mxu0 0.0
  %243 = vmatpush.msra.mxu0 0.0
  %244 = vmatpush.msra.mxu0 0.0
  %245 = vmatpush.msra.mxu0 %v100
  %246 = vmatpush.msra.mxu0 %v14
  %247 = vmatpush.msra.mxu0 %v13
  %248 = vmatmul.f32.gmra.mxu0 %v228
  %v249 = vpop.f32.mrf.mxu0
  %v250 = vadd.f32 0.0, %v249
  %251 = vmatmul.f32.gmra.mxu0 %v230
  %v252 = vpop.f32.mrf.mxu0
  %v253 = vadd.f32 0.0, %v252
  %254 = vdwg.mxu0
  %v255 = vadd.f32 %v84, %v250
  %v256 = vadd.f32 %v87, %v253
  %v257 = vtanh.pop %v255
  %v258 = vtanh.pop %v256
  %259 = vst.msk [vmem:[%s2] sm:$0xff] %vm91, %v257
  %vm260 = vcmask 156672
  %261 = vst.msk [vmem:[%s2 + $0x8] sm:$0x3] %vm260, %v258
  // Predicated region
  $region10: #{rnn_forward.1} parent=0 // pred_check
    _
  $region11: #{rnn_forward.1} parent=0 // pred_check_branch
    %263 = sbr.rel (0) target = $region13
  $region12: #{rnn_forward.1} parent=0 // pred_region
    _
  $region13: #{rnn_forward.1} parent=0 // pred_fallthru
    _
  // Predicated region
  $region14: #{rnn_forward.1} parent=0 // pred_check
    _
  $region15: #{rnn_forward.1} parent=0 // pred_check_branch
    %265 = sbr.rel (0) target = $region17
  $region16: #{rnn_forward.1} parent=0 // pred_region
    _
  $region17: #{rnn_forward.1} parent=0 // pred_fallthru
    _

</llo_original>
